<compile_context>
chip_gen: v6e
topology: v6e:2x2x1
jax: 0.10.0
libtpu: 0.0.40
codegen_flags: <defaults>
</compile_context>

<pallas_src>
import jax
import jax.numpy as jnp
import numpy as np
from jax import lax
from jax.experimental import pallas as pl
from jax.experimental.pallas import tpu as pltpu


# ------------------------------ fused Pallas kernel ------------------------------

def _cnn_fused_kernel(xz_ref, w1_ref, b1_ref, w2_ref, b2_ref, wl_ref, bl_ref,
                      o_ref, z1p_ref):
    f32 = jnp.float32
    N = xz_ref.shape[0]
    H1, W1, C0, C1 = 16, 16, 3, 8          # conv1: 16x16 spatial, 3 -> 8 channels
    H2, W2, C2 = 8, 8, 16                  # conv2:  8x8 spatial, 8 -> 16 channels

    # ---------------- Conv1 (3x3, pad 1) + ReLU ----------------
    # One banded matmul per kh tap; kw taps + w-block layout folded into w1_ref.
    xz = xz_ref[...]                                            # (N, 18, 48)
    y1 = b1_ref[...]                                            # (1, 128) broadcast
    for dy in range(3):
        slab = xz[:, dy:dy + H1, :].reshape(N * H1, W1 * C0)    # (N*16, 48)
        y1 = y1 + jnp.dot(slab, w1_ref[dy], preferred_element_type=f32)
    y1 = jnp.maximum(y1, 0.0).reshape(N, H1, W1 * C1)           # (N, 16, 128)

    # ---------------- MaxPool 2x2 ----------------
    # Column layout puts the two w's of each pool pair in opposite 64-lane halves.
    half1 = (W1 // 2) * C1                                      # 64
    yw = jnp.maximum(y1[:, :, :half1], y1[:, :, half1:])        # (N, 16, 64)
    # h-reduction: write pooled rows into the zero-padded conv2 input scratch.
    z1p_ref[...] = jnp.zeros(z1p_ref.shape, f32)                # rows 0 / 9 = h padding
    for oh in range(H1 // 2):
        z1p_ref[:, oh + 1:oh + 2, :] = jnp.maximum(
            yw[:, 2 * oh:2 * oh + 1, :], yw[:, 2 * oh + 1:2 * oh + 2, :])

    # ---------------- Conv2 (3x3, pad 1) + ReLU ----------------
    z1p = z1p_ref[...]                                          # (N, 10, 64)
    y2 = b2_ref[...]                                            # (1, 128)
    for dy in range(3):
        slab = z1p[:, dy:dy + H2, :].reshape(N * H2, W2 * C1)   # (N*8, 64)
        y2 = y2 + jnp.dot(slab, w2_ref[dy], preferred_element_type=f32)
    y2 = jnp.maximum(y2, 0.0).reshape(N, H2, W2 * C2)           # (N, 8, 128)

    # ---------------- MaxPool 2x2 ----------------
    half2 = (W2 // 2) * C2                                      # 64
    yw2 = jnp.maximum(y2[:, :, :half2], y2[:, :, half2:])       # (N, 8, 64)
    r = [jnp.maximum(yw2[:, 2 * oh:2 * oh + 1, :], yw2[:, 2 * oh + 1:2 * oh + 2, :])
         for oh in range(H2 // 2)]                              # 4 x (N, 1, 64)

    # ---------------- AdaptiveAvgPool2d((2,2)) on the 4x4 map ----------------
    quart = half2 // 2                                          # 32
    s0 = r[0] + r[1]                                            # output row oh = 0
    s1 = r[2] + r[3]                                            # output row oh = 1
    a0 = (s0[:, :, :quart] + s0[:, :, quart:]).reshape(N, quart) * 0.25   # (N, 32)
    a1 = (s1[:, :, :quart] + s1[:, :, quart:]).reshape(N, quart) * 0.25   # (N, 32)

    # -------- flatten (torch NCHW order folded into wl) + Linear(64, 32) --------
    out = (jnp.dot(a0, wl_ref[0], preferred_element_type=f32) +
           jnp.dot(a1, wl_ref[1], preferred_element_type=f32) + bl_ref[...])
    o_ref[...] = out.astype(o_ref.dtype)


# --------------------------- host-side parameter folding ---------------------------

def _fold_conv_weight(w, Wsp, out_block_perm):
    """Fold the kw (dx) taps and the per-w block structure of a 3x3 stride-1 'same'
    conv into three banded matmul weights (one per kh/dy tap).

    Rows:    input lane  = w_in * Cin + cin          (standard W*C lane layout)
    Columns: output lane = out_block_perm[w_out] * Cout + cout
    """
    w_np = np.asarray(w)                                       # (Co, Ci, 3, 3) torch layout
    Co, Ci = w_np.shape[0], w_np.shape[1]
    mats = np.zeros((3, Wsp, Ci, Wsp, Co), np.float32)
    for dy in range(3):
        for dx in range(3):
            tap = w_np[:, :, dy, dx].T                         # (Ci, Co)
            for w_out in range(Wsp):
                w_in = w_out + dx - 1
                if 0 <= w_in < Wsp:
                    mats[dy, w_in, :, out_block_perm[w_out], :] += tap
    return jnp.asarray(mats.reshape(3, Wsp * Ci, Wsp * Co))


def _fold_linear_weight(wl, C2=16):
    """WL[oh, ow*C2 + c, o] = wl[o, c*4 + oh*2 + ow]  (torch NCHW flatten order)."""
    wl_np = np.asarray(wl)                                     # (OUT, 64)
    OUT = wl_np.shape[0]
    wlr = wl_np.reshape(OUT, C2, 2, 2)                         # (o, c, oh, ow)
    out = np.transpose(wlr, (2, 3, 1, 0))                      # (oh, ow, c, o)
    return jnp.asarray(out.reshape(2, 2 * C2, OUT).astype(np.float32))


def prepare_params(params):
    """Fold torch-layout CNN parameters into the fused kernel's matmul weights."""
    w1, b1, w2, b2, wl, bl = params
    C1, C2, OUT = 8, 16, 32
    W1, W2 = 16, 8
    # conv1 columns: pool-1 pairs (w, w+1) land in opposite 64-lane halves
    perm1 = [(w % 2) * (W1 // 2) + (w // 2) for w in range(W1)]
    # conv2 columns: 3-bit bit-reversal so both pool-2 and the 2x2 avg-pool
    # w-reductions are "combine the two lane halves"
    perm2 = [((v & 1) << 2) | (v & 2) | ((v >> 2) & 1) for v in range(W2)]

    w1p = _fold_conv_weight(w1, W1, perm1)                     # (3, 48, 128)
    w2p = _fold_conv_weight(w2, W2, perm2)                     # (3, 64, 128)
    b1p = jnp.tile(b1, W1).reshape(1, W1 * C1)                 # (1, 128)
    b2p = jnp.tile(b2, W2).reshape(1, W2 * C2)                 # (1, 128)
    wlp = _fold_linear_weight(wl, C2)                          # (2, 32, 32)
    blp = bl.reshape(1, OUT)                                   # (1, 32)
    return (w1p, b1p, w2p, b2p, wlp, blp)


# --------------------------------- forward wrapper ---------------------------------

@jax.jit
def cnn_forward(x_nchw, prepped):
    w1p, b1p, w2p, b2p, wlp, blp = prepped
    N = x_nchw.shape[0]
    OUT = blp.shape[1]
    # Only host-side prep: NCHW -> (N, H+2, W*Cin) with one zero row top/bottom (tiny).
    xh = jnp.transpose(x_nchw, (0, 2, 3, 1))                            # (N, 16, 16, 3)
    xz = jnp.pad(xh, ((0, 0), (1, 1), (0, 0), (0, 0))).reshape(N, 18, 16 * 3)

    vmem = pltpu.MemorySpace.VMEM
    return pl.pallas_call(
        _cnn_fused_kernel,
        out_shape=jax.ShapeDtypeStruct((N, OUT), jnp.float32),
        in_specs=[pl.BlockSpec(memory_space=vmem) for _ in range(7)],
        out_specs=pl.BlockSpec(memory_space=vmem),
        scratch_shapes=[pltpu.VMEM((N, 10, 8 * 8), jnp.float32)],   # row-padded conv2 input
        # TODO(synk): on v7x (2 TensorCores/chip) the batch could also be sharded across
        # cores via a parallel grid axis / core_map; at N=2 and this size it is not worth it.
    )(xz, w1p, b1p, w2p, b2p, wlp, blp)


# ------------------------------ pure-JAX torch reference ------------------------------

def torch_reference(x, params):
    w1, b1, w2, b2, wl, bl = params
    dn = ("NCHW", "OIHW", "NCHW")
    y = lax.conv_general_dilated(x, w1, (1, 1), ((1, 1), (1, 1)), dimension_numbers=dn)
    y = jnp.maximum(y + b1[None, :, None, None], 0.0)
    y = lax.reduce_window(y, -jnp.inf, lax.max, (1, 1, 2, 2), (1, 1, 2, 2), "VALID")
    y = lax.conv_general_dilated(y, w2, (1, 1), ((1, 1), (1, 1)), dimension_numbers=dn)
    y = jnp.maximum(y + b2[None, :, None, None], 0.0)
    y = lax.reduce_window(y, -jnp.inf, lax.max, (1, 1, 2, 2), (1, 1, 2, 2), "VALID")
    N, C, H3, W3 = y.shape
    kh, kw = H3 // 2, W3 // 2
    y = lax.reduce_window(y, 0.0, lax.add, (1, 1, kh, kw), (1, 1, kh, kw), "VALID") / (kh * kw)
    y = y.reshape(N, -1)
    return y @ wl.T + bl


if __name__ == "__main__":
    key = jax.random.PRNGKey(0)
    kx, k1, k2, k3, k4, k5, k6 = jax.random.split(key, 7)
    # Deterministic synthetic parameters (torch layouts):
    #   conv1 (8,3,3,3)+(8,), conv2 (16,8,3,3)+(16,), linear (32,64)+(32,)
    x = jax.random.normal(kx, (2, 3, 16, 16), jnp.float32)
    w1 = 0.2 * jax.random.normal(k1, (8, 3, 3, 3), jnp.float32)
    b1 = 0.1 * jax.random.normal(k2, (8,), jnp.float32)
    w2 = 0.2 * jax.random.normal(k3, (16, 8, 3, 3), jnp.float32)
    b2 = 0.1 * jax.random.normal(k4, (16,), jnp.float32)
    wl = 0.2 * jax.random.normal(k5, (32, 64), jnp.float32)
    bl = 0.1 * jax.random.normal(k6, (32,), jnp.float32)
    params = (w1, b1, w2, b2, wl, bl)

    prepped = prepare_params(params)
    out = jax.block_until_ready(cnn_forward(x, prepped))
    ref = jax.block_until_ready(torch_reference(x, params))
    assert out.shape == (2, 32), out.shape
    if not jnp.allclose(out, ref, rtol=1e-4, atol=1e-4):
        err = float(jnp.max(jnp.abs(out - ref)))
        raise AssertionError(f"Pallas CNN output does not match reference (max abs err {err})")
    print("KERNEL_OK")
</pallas_src>

<mosaic_0001>
module attributes {stable_mosaic.version = 11 : i64} {
  func.func @_cnn_fused_kernel(%arg0: memref<2x18x48xf32, #tpu.memory_space<vmem>>, %arg1: memref<3x48x128xf32, #tpu.memory_space<vmem>>, %arg2: memref<1x128xf32, #tpu.memory_space<vmem>>, %arg3: memref<3x64x128xf32, #tpu.memory_space<vmem>>, %arg4: memref<1x128xf32, #tpu.memory_space<vmem>>, %arg5: memref<2x32x32xf32, #tpu.memory_space<vmem>>, %arg6: memref<1x32xf32, #tpu.memory_space<vmem>>, %arg7: memref<2x32xf32, #tpu.memory_space<vmem>>, %arg8: memref<2x10x64xf32, #tpu.memory_space<vmem>>) attributes {dimension_semantics = [], scalar_prefetch = 0 : i64, scratch_operands = 1 : i64, tpu.core_type = #tpu.core_type<tc>} {
    %c0 = arith.constant 0 : index
    %c0_0 = arith.constant 0 : index
    %c0_1 = arith.constant 0 : index
    %0 = vector.load %arg0[%c0, %c0_0, %c0_1] : memref<2x18x48xf32, #tpu.memory_space<vmem>>, vector<2x18x48xf32>
    %c0_2 = arith.constant 0 : index
    %c0_3 = arith.constant 0 : index
    %1 = vector.load %arg2[%c0_2, %c0_3] : memref<1x128xf32, #tpu.memory_space<vmem>>, vector<1x128xf32>
    %2 = vector.extract_strided_slice %0 {offsets = [0, 0, 0], sizes = [2, 16, 48], strides = [1, 1, 1]} : vector<2x18x48xf32> to vector<2x16x48xf32>
    %3 = vector.shape_cast %2 : vector<2x16x48xf32> to vector<32x48xf32>
    %c0_4 = arith.constant 0 : index
    %c0_5 = arith.constant 0 : index
    %c0_6 = arith.constant 0 : index
    %4 = vector.load %arg1[%c0_4, %c0_5, %c0_6] : memref<3x48x128xf32, #tpu.memory_space<vmem>>, vector<1x48x128xf32>
    %5 = vector.shape_cast %4 : vector<1x48x128xf32> to vector<48x128xf32>
    %cst = arith.constant dense<0.000000e+00> : vector<32x128xf32>
    %6 = tpu.matmul %3, %5, %cst {dimension_numbers = #tpu.dot_dimension_numbers<[1], [0], [0], [1], [0, 0, 1, 1], [], []>} : vector<32x48xf32>, vector<48x128xf32>, vector<32x128xf32> -> vector<32x128xf32>
    %7 = vector.broadcast %1 : vector<1x128xf32> to vector<32x128xf32>
    %8 = arith.addf %7, %6 : vector<32x128xf32>
    %9 = vector.extract_strided_slice %0 {offsets = [0, 1, 0], sizes = [2, 16, 48], strides = [1, 1, 1]} : vector<2x18x48xf32> to vector<2x16x48xf32>
    %10 = vector.shape_cast %9 : vector<2x16x48xf32> to vector<32x48xf32>
    %c1 = arith.constant 1 : index
    %c0_7 = arith.constant 0 : index
    %c0_8 = arith.constant 0 : index
    %11 = vector.load %arg1[%c1, %c0_7, %c0_8] : memref<3x48x128xf32, #tpu.memory_space<vmem>>, vector<1x48x128xf32>
    %12 = vector.shape_cast %11 : vector<1x48x128xf32> to vector<48x128xf32>
    %cst_9 = arith.constant dense<0.000000e+00> : vector<32x128xf32>
    %13 = tpu.matmul %10, %12, %cst_9 {dimension_numbers = #tpu.dot_dimension_numbers<[1], [0], [0], [1], [0, 0, 1, 1], [], []>} : vector<32x48xf32>, vector<48x128xf32>, vector<32x128xf32> -> vector<32x128xf32>
    %14 = arith.addf %8, %13 : vector<32x128xf32>
    %15 = vector.extract_strided_slice %0 {offsets = [0, 2, 0], sizes = [2, 16, 48], strides = [1, 1, 1]} : vector<2x18x48xf32> to vector<2x16x48xf32>
    %16 = vector.shape_cast %15 : vector<2x16x48xf32> to vector<32x48xf32>
    %c2 = arith.constant 2 : index
    %c0_10 = arith.constant 0 : index
    %c0_11 = arith.constant 0 : index
    %17 = vector.load %arg1[%c2, %c0_10, %c0_11] : memref<3x48x128xf32, #tpu.memory_space<vmem>>, vector<1x48x128xf32>
    %18 = vector.shape_cast %17 : vector<1x48x128xf32> to vector<48x128xf32>
    %cst_12 = arith.constant dense<0.000000e+00> : vector<32x128xf32>
    %19 = tpu.matmul %16, %18, %cst_12 {dimension_numbers = #tpu.dot_dimension_numbers<[1], [0], [0], [1], [0, 0, 1, 1], [], []>} : vector<32x48xf32>, vector<48x128xf32>, vector<32x128xf32> -> vector<32x128xf32>
    %20 = arith.addf %14, %19 : vector<32x128xf32>
    %cst_13 = arith.constant 0.000000e+00 : f32
    %21 = vector.broadcast %cst_13 : f32 to vector<32x128xf32>
    %22 = arith.maximumf %20, %21 : vector<32x128xf32>
    %23 = vector.shape_cast %22 : vector<32x128xf32> to vector<2x16x128xf32>
    %24 = vector.extract_strided_slice %23 {offsets = [0, 0, 0], sizes = [2, 16, 64], strides = [1, 1, 1]} : vector<2x16x128xf32> to vector<2x16x64xf32>
    %25 = vector.extract_strided_slice %23 {offsets = [0, 0, 64], sizes = [2, 16, 64], strides = [1, 1, 1]} : vector<2x16x128xf32> to vector<2x16x64xf32>
    %26 = arith.maximumf %24, %25 : vector<2x16x64xf32>
    %cst_14 = arith.constant 0.000000e+00 : f32
    %27 = vector.broadcast %cst_14 : f32 to vector<2x10x64xf32>
    %c0_15 = arith.constant 0 : index
    %c0_16 = arith.constant 0 : index
    %c0_17 = arith.constant 0 : index
    %28 = vector.load %arg8[%c0_15, %c0_16, %c0_17] : memref<2x10x64xf32, #tpu.memory_space<vmem>>, vector<2x10x64xf32>
    tpu.vector_store %arg8[%c0_15, %c0_16, %c0_17], %27 {strides = array<i32>} : memref<2x10x64xf32, #tpu.memory_space<vmem>>, vector<2x10x64xf32>,
    %29 = vector.extract_strided_slice %26 {offsets = [0, 0, 0], sizes = [2, 1, 64], strides = [1, 1, 1]} : vector<2x16x64xf32> to vector<2x1x64xf32>
    %30 = vector.extract_strided_slice %26 {offsets = [0, 1, 0], sizes = [2, 1, 64], strides = [1, 1, 1]} : vector<2x16x64xf32> to vector<2x1x64xf32>
    %31 = arith.maximumf %29, %30 : vector<2x1x64xf32>
    %c0_18 = arith.constant 0 : index
    %c1_19 = arith.constant 1 : index
    %c0_20 = arith.constant 0 : index
    %32 = vector.load %arg8[%c0_18, %c1_19, %c0_20] : memref<2x10x64xf32, #tpu.memory_space<vmem>>, vector<2x1x64xf32>
    tpu.vector_store %arg8[%c0_18, %c1_19, %c0_20], %31 {strides = array<i32>} : memref<2x10x64xf32, #tpu.memory_space<vmem>>, vector<2x1x64xf32>,
    %33 = vector.extract_strided_slice %26 {offsets = [0, 2, 0], sizes = [2, 1, 64], strides = [1, 1, 1]} : vector<2x16x64xf32> to vector<2x1x64xf32>
    %34 = vector.extract_strided_slice %26 {offsets = [0, 3, 0], sizes = [2, 1, 64], strides = [1, 1, 1]} : vector<2x16x64xf32> to vector<2x1x64xf32>
    %35 = arith.maximumf %33, %34 : vector<2x1x64xf32>
    %c0_21 = arith.constant 0 : index
    %c2_22 = arith.constant 2 : index
    %c0_23 = arith.constant 0 : index
    %36 = vector.load %arg8[%c0_21, %c2_22, %c0_23] : memref<2x10x64xf32, #tpu.memory_space<vmem>>, vector<2x1x64xf32>
    tpu.vector_store %arg8[%c0_21, %c2_22, %c0_23], %35 {strides = array<i32>} : memref<2x10x64xf32, #tpu.memory_space<vmem>>, vector<2x1x64xf32>,
    %37 = vector.extract_strided_slice %26 {offsets = [0, 4, 0], sizes = [2, 1, 64], strides = [1, 1, 1]} : vector<2x16x64xf32> to vector<2x1x64xf32>
    %38 = vector.extract_strided_slice %26 {offsets = [0, 5, 0], sizes = [2, 1, 64], strides = [1, 1, 1]} : vector<2x16x64xf32> to vector<2x1x64xf32>
    %39 = arith.maximumf %37, %38 : vector<2x1x64xf32>
    %c0_24 = arith.constant 0 : index
    %c3 = arith.constant 3 : index
    %c0_25 = arith.constant 0 : index
    %40 = vector.load %arg8[%c0_24, %c3, %c0_25] : memref<2x10x64xf32, #tpu.memory_space<vmem>>, vector<2x1x64xf32>
    tpu.vector_store %arg8[%c0_24, %c3, %c0_25], %39 {strides = array<i32>} : memref<2x10x64xf32, #tpu.memory_space<vmem>>, vector<2x1x64xf32>,
    %41 = vector.extract_strided_slice %26 {offsets = [0, 6, 0], sizes = [2, 1, 64], strides = [1, 1, 1]} : vector<2x16x64xf32> to vector<2x1x64xf32>
    %42 = vector.extract_strided_slice %26 {offsets = [0, 7, 0], sizes = [2, 1, 64], strides = [1, 1, 1]} : vector<2x16x64xf32> to vector<2x1x64xf32>
    %43 = arith.maximumf %41, %42 : vector<2x1x64xf32>
    %c0_26 = arith.constant 0 : index
    %c4 = arith.constant 4 : index
    %c0_27 = arith.constant 0 : index
    %44 = vector.load %arg8[%c0_26, %c4, %c0_27] : memref<2x10x64xf32, #tpu.memory_space<vmem>>, vector<2x1x64xf32>
    tpu.vector_store %arg8[%c0_26, %c4, %c0_27], %43 {strides = array<i32>} : memref<2x10x64xf32, #tpu.memory_space<vmem>>, vector<2x1x64xf32>,
    %45 = vector.extract_strided_slice %26 {offsets = [0, 8, 0], sizes = [2, 1, 64], strides = [1, 1, 1]} : vector<2x16x64xf32> to vector<2x1x64xf32>
    %46 = vector.extract_strided_slice %26 {offsets = [0, 9, 0], sizes = [2, 1, 64], strides = [1, 1, 1]} : vector<2x16x64xf32> to vector<2x1x64xf32>
    %47 = arith.maximumf %45, %46 : vector<2x1x64xf32>
    %c0_28 = arith.constant 0 : index
    %c5 = arith.constant 5 : index
    %c0_29 = arith.constant 0 : index
    %48 = vector.load %arg8[%c0_28, %c5, %c0_29] : memref<2x10x64xf32, #tpu.memory_space<vmem>>, vector<2x1x64xf32>
    tpu.vector_store %arg8[%c0_28, %c5, %c0_29], %47 {strides = array<i32>} : memref<2x10x64xf32, #tpu.memory_space<vmem>>, vector<2x1x64xf32>,
    %49 = vector.extract_strided_slice %26 {offsets = [0, 10, 0], sizes = [2, 1, 64], strides = [1, 1, 1]} : vector<2x16x64xf32> to vector<2x1x64xf32>
    %50 = vector.extract_strided_slice %26 {offsets = [0, 11, 0], sizes = [2, 1, 64], strides = [1, 1, 1]} : vector<2x16x64xf32> to vector<2x1x64xf32>
    %51 = arith.maximumf %49, %50 : vector<2x1x64xf32>
    %c0_30 = arith.constant 0 : index
    %c6 = arith.constant 6 : index
    %c0_31 = arith.constant 0 : index
    %52 = vector.load %arg8[%c0_30, %c6, %c0_31] : memref<2x10x64xf32, #tpu.memory_space<vmem>>, vector<2x1x64xf32>
    tpu.vector_store %arg8[%c0_30, %c6, %c0_31], %51 {strides = array<i32>} : memref<2x10x64xf32, #tpu.memory_space<vmem>>, vector<2x1x64xf32>,
    %53 = vector.extract_strided_slice %26 {offsets = [0, 12, 0], sizes = [2, 1, 64], strides = [1, 1, 1]} : vector<2x16x64xf32> to vector<2x1x64xf32>
    %54 = vector.extract_strided_slice %26 {offsets = [0, 13, 0], sizes = [2, 1, 64], strides = [1, 1, 1]} : vector<2x16x64xf32> to vector<2x1x64xf32>
    %55 = arith.maximumf %53, %54 : vector<2x1x64xf32>
    %c0_32 = arith.constant 0 : index
    %c7 = arith.constant 7 : index
    %c0_33 = arith.constant 0 : index
    %56 = vector.load %arg8[%c0_32, %c7, %c0_33] : memref<2x10x64xf32, #tpu.memory_space<vmem>>, vector<2x1x64xf32>
    tpu.vector_store %arg8[%c0_32, %c7, %c0_33], %55 {strides = array<i32>} : memref<2x10x64xf32, #tpu.memory_space<vmem>>, vector<2x1x64xf32>,
    %57 = vector.extract_strided_slice %26 {offsets = [0, 14, 0], sizes = [2, 1, 64], strides = [1, 1, 1]} : vector<2x16x64xf32> to vector<2x1x64xf32>
    %58 = vector.extract_strided_slice %26 {offsets = [0, 15, 0], sizes = [2, 1, 64], strides = [1, 1, 1]} : vector<2x16x64xf32> to vector<2x1x64xf32>
    %59 = arith.maximumf %57, %58 : vector<2x1x64xf32>
    %c0_34 = arith.constant 0 : index
    %c8 = arith.constant 8 : index
    %c0_35 = arith.constant 0 : index
    %60 = vector.load %arg8[%c0_34, %c8, %c0_35] : memref<2x10x64xf32, #tpu.memory_space<vmem>>, vector<2x1x64xf32>
    tpu.vector_store %arg8[%c0_34, %c8, %c0_35], %59 {strides = array<i32>} : memref<2x10x64xf32, #tpu.memory_space<vmem>>, vector<2x1x64xf32>,
    %c0_36 = arith.constant 0 : index
    %c0_37 = arith.constant 0 : index
    %c0_38 = arith.constant 0 : index
    %61 = vector.load %arg8[%c0_36, %c0_37, %c0_38] : memref<2x10x64xf32, #tpu.memory_space<vmem>>, vector<2x10x64xf32>
    %c0_39 = arith.constant 0 : index
    %c0_40 = arith.constant 0 : index
    %62 = vector.load %arg4[%c0_39, %c0_40] : memref<1x128xf32, #tpu.memory_space<vmem>>, vector<1x128xf32>
    %63 = vector.extract_strided_slice %61 {offsets = [0, 0, 0], sizes = [2, 8, 64], strides = [1, 1, 1]} : vector<2x10x64xf32> to vector<2x8x64xf32>
    %64 = vector.shape_cast %63 : vector<2x8x64xf32> to vector<16x64xf32>
    %c0_41 = arith.constant 0 : index
    %c0_42 = arith.constant 0 : index
    %c0_43 = arith.constant 0 : index
    %65 = vector.load %arg3[%c0_41, %c0_42, %c0_43] : memref<3x64x128xf32, #tpu.memory_space<vmem>>, vector<1x64x128xf32>
    %66 = vector.shape_cast %65 : vector<1x64x128xf32> to vector<64x128xf32>
    %cst_44 = arith.constant dense<0.000000e+00> : vector<16x128xf32>
    %67 = tpu.matmul %64, %66, %cst_44 {dimension_numbers = #tpu.dot_dimension_numbers<[1], [0], [0], [1], [0, 0, 1, 1], [], []>} : vector<16x64xf32>, vector<64x128xf32>, vector<16x128xf32> -> vector<16x128xf32>
    %68 = vector.broadcast %62 : vector<1x128xf32> to vector<16x128xf32>
    %69 = arith.addf %68, %67 : vector<16x128xf32>
    %70 = vector.extract_strided_slice %61 {offsets = [0, 1, 0], sizes = [2, 8, 64], strides = [1, 1, 1]} : vector<2x10x64xf32> to vector<2x8x64xf32>
    %71 = vector.shape_cast %70 : vector<2x8x64xf32> to vector<16x64xf32>
    %c1_45 = arith.constant 1 : index
    %c0_46 = arith.constant 0 : index
    %c0_47 = arith.constant 0 : index
    %72 = vector.load %arg3[%c1_45, %c0_46, %c0_47] : memref<3x64x128xf32, #tpu.memory_space<vmem>>, vector<1x64x128xf32>
    %73 = vector.shape_cast %72 : vector<1x64x128xf32> to vector<64x128xf32>
    %cst_48 = arith.constant dense<0.000000e+00> : vector<16x128xf32>
    %74 = tpu.matmul %71, %73, %cst_48 {dimension_numbers = #tpu.dot_dimension_numbers<[1], [0], [0], [1], [0, 0, 1, 1], [], []>} : vector<16x64xf32>, vector<64x128xf32>, vector<16x128xf32> -> vector<16x128xf32>
    %75 = arith.addf %69, %74 : vector<16x128xf32>
    %76 = vector.extract_strided_slice %61 {offsets = [0, 2, 0], sizes = [2, 8, 64], strides = [1, 1, 1]} : vector<2x10x64xf32> to vector<2x8x64xf32>
    %77 = vector.shape_cast %76 : vector<2x8x64xf32> to vector<16x64xf32>
    %c2_49 = arith.constant 2 : index
    %c0_50 = arith.constant 0 : index
    %c0_51 = arith.constant 0 : index
    %78 = vector.load %arg3[%c2_49, %c0_50, %c0_51] : memref<3x64x128xf32, #tpu.memory_space<vmem>>, vector<1x64x128xf32>
    %79 = vector.shape_cast %78 : vector<1x64x128xf32> to vector<64x128xf32>
    %cst_52 = arith.constant dense<0.000000e+00> : vector<16x128xf32>
    %80 = tpu.matmul %77, %79, %cst_52 {dimension_numbers = #tpu.dot_dimension_numbers<[1], [0], [0], [1], [0, 0, 1, 1], [], []>} : vector<16x64xf32>, vector<64x128xf32>, vector<16x128xf32> -> vector<16x128xf32>
    %81 = arith.addf %75, %80 : vector<16x128xf32>
    %cst_53 = arith.constant 0.000000e+00 : f32
    %82 = vector.broadcast %cst_53 : f32 to vector<16x128xf32>
    %83 = arith.maximumf %81, %82 : vector<16x128xf32>
    %84 = vector.shape_cast %83 : vector<16x128xf32> to vector<2x8x128xf32>
    %85 = vector.extract_strided_slice %84 {offsets = [0, 0, 0], sizes = [2, 8, 64], strides = [1, 1, 1]} : vector<2x8x128xf32> to vector<2x8x64xf32>
    %86 = vector.extract_strided_slice %84 {offsets = [0, 0, 64], sizes = [2, 8, 64], strides = [1, 1, 1]} : vector<2x8x128xf32> to vector<2x8x64xf32>
    %87 = arith.maximumf %85, %86 : vector<2x8x64xf32>
    %88 = vector.extract_strided_slice %87 {offsets = [0, 0, 0], sizes = [2, 1, 64], strides = [1, 1, 1]} : vector<2x8x64xf32> to vector<2x1x64xf32>
    %89 = vector.extract_strided_slice %87 {offsets = [0, 1, 0], sizes = [2, 1, 64], strides = [1, 1, 1]} : vector<2x8x64xf32> to vector<2x1x64xf32>
    %90 = arith.maximumf %88, %89 : vector<2x1x64xf32>
    %91 = vector.extract_strided_slice %87 {offsets = [0, 2, 0], sizes = [2, 1, 64], strides = [1, 1, 1]} : vector<2x8x64xf32> to vector<2x1x64xf32>
    %92 = vector.extract_strided_slice %87 {offsets = [0, 3, 0], sizes = [2, 1, 64], strides = [1, 1, 1]} : vector<2x8x64xf32> to vector<2x1x64xf32>
    %93 = arith.maximumf %91, %92 : vector<2x1x64xf32>
    %94 = vector.extract_strided_slice %87 {offsets = [0, 4, 0], sizes = [2, 1, 64], strides = [1, 1, 1]} : vector<2x8x64xf32> to vector<2x1x64xf32>
    %95 = vector.extract_strided_slice %87 {offsets = [0, 5, 0], sizes = [2, 1, 64], strides = [1, 1, 1]} : vector<2x8x64xf32> to vector<2x1x64xf32>
    %96 = arith.maximumf %94, %95 : vector<2x1x64xf32>
    %97 = vector.extract_strided_slice %87 {offsets = [0, 6, 0], sizes = [2, 1, 64], strides = [1, 1, 1]} : vector<2x8x64xf32> to vector<2x1x64xf32>
    %98 = vector.extract_strided_slice %87 {offsets = [0, 7, 0], sizes = [2, 1, 64], strides = [1, 1, 1]} : vector<2x8x64xf32> to vector<2x1x64xf32>
    %99 = arith.maximumf %97, %98 : vector<2x1x64xf32>
    %100 = arith.addf %90, %93 : vector<2x1x64xf32>
    %101 = arith.addf %96, %99 : vector<2x1x64xf32>
    %102 = vector.extract_strided_slice %100 {offsets = [0, 0, 0], sizes = [2, 1, 32], strides = [1, 1, 1]} : vector<2x1x64xf32> to vector<2x1x32xf32>
    %103 = vector.extract_strided_slice %100 {offsets = [0, 0, 32], sizes = [2, 1, 32], strides = [1, 1, 1]} : vector<2x1x64xf32> to vector<2x1x32xf32>
    %104 = arith.addf %102, %103 : vector<2x1x32xf32>
    %105 = vector.shape_cast %104 : vector<2x1x32xf32> to vector<2x32xf32>
    %cst_54 = arith.constant 2.500000e-01 : f32
    %106 = vector.broadcast %cst_54 : f32 to vector<2x32xf32>
    %107 = arith.mulf %105, %106 : vector<2x32xf32>
    %108 = vector.extract_strided_slice %101 {offsets = [0, 0, 0], sizes = [2, 1, 32], strides = [1, 1, 1]} : vector<2x1x64xf32> to vector<2x1x32xf32>
    %109 = vector.extract_strided_slice %101 {offsets = [0, 0, 32], sizes = [2, 1, 32], strides = [1, 1, 1]} : vector<2x1x64xf32> to vector<2x1x32xf32>
    %110 = arith.addf %108, %109 : vector<2x1x32xf32>
    %111 = vector.shape_cast %110 : vector<2x1x32xf32> to vector<2x32xf32>
    %cst_55 = arith.constant 2.500000e-01 : f32
    %112 = vector.broadcast %cst_55 : f32 to vector<2x32xf32>
    %113 = arith.mulf %111, %112 : vector<2x32xf32>
    %c0_56 = arith.constant 0 : index
    %c0_57 = arith.constant 0 : index
    %c0_58 = arith.constant 0 : index
    %114 = vector.load %arg5[%c0_56, %c0_57, %c0_58] : memref<2x32x32xf32, #tpu.memory_space<vmem>>, vector<1x32x32xf32>
    %115 = vector.shape_cast %114 : vector<1x32x32xf32> to vector<32x32xf32>
    %cst_59 = arith.constant dense<0.000000e+00> : vector<2x32xf32>
    %116 = tpu.matmul %107, %115, %cst_59 {dimension_numbers = #tpu.dot_dimension_numbers<[1], [0], [0], [1], [0, 0, 1, 1], [], []>} : vector<2x32xf32>, vector<32x32xf32>, vector<2x32xf32> -> vector<2x32xf32>
    %c1_60 = arith.constant 1 : index
    %c0_61 = arith.constant 0 : index
    %c0_62 = arith.constant 0 : index
    %117 = vector.load %arg5[%c1_60, %c0_61, %c0_62] : memref<2x32x32xf32, #tpu.memory_space<vmem>>, vector<1x32x32xf32>
    %118 = vector.shape_cast %117 : vector<1x32x32xf32> to vector<32x32xf32>
    %cst_63 = arith.constant dense<0.000000e+00> : vector<2x32xf32>
    %119 = tpu.matmul %113, %118, %cst_63 {dimension_numbers = #tpu.dot_dimension_numbers<[1], [0], [0], [1], [0, 0, 1, 1], [], []>} : vector<2x32xf32>, vector<32x32xf32>, vector<2x32xf32> -> vector<2x32xf32>
    %120 = arith.addf %116, %119 : vector<2x32xf32>
    %c0_64 = arith.constant 0 : index
    %c0_65 = arith.constant 0 : index
    %121 = vector.load %arg6[%c0_64, %c0_65] : memref<1x32xf32, #tpu.memory_space<vmem>>, vector<1x32xf32>
    %122 = vector.broadcast %121 : vector<1x32xf32> to vector<2x32xf32>
    %123 = arith.addf %120, %122 : vector<2x32xf32>
    %c0_66 = arith.constant 0 : index
    %c0_67 = arith.constant 0 : index
    %124 = vector.load %arg7[%c0_66, %c0_67] : memref<2x32xf32, #tpu.memory_space<vmem>>, vector<2x32xf32>
    tpu.vector_store %arg7[%c0_66, %c0_67], %123 {strides = array<i32>} : memref<2x32xf32, #tpu.memory_space<vmem>>, vector<2x32xf32>,
    return
  }
}

</mosaic_0001>

<llo_original>
// kernel: cnn_forward.1
$region0: #{cnn_forward.1}
  #allocation0 [shape = 'u32[]', space=smem, size = 0x4, offset = 0x4, fixed_abs, tag = 'smem constant byte address 0x4 - core index']
  #allocation1 [shape = 'u32[144,128]{1,0:T(1,128)}', space=vmem, size = 0x12000, scoped, tag = 'internal scratch']
  #allocation2 [shape = 'f32[2,10,64]{2,1,0:T(8,128)}', space=vmem, size = 0x4000, scoped, tag = 'scratch operand']
  %s0 = inlined_call_operand.vmem [shape: f32[2,18,48], index: 0, kind: input, shape index: {}]
  %s1 = inlined_call_operand.vmem [shape: f32[3,48,128], index: 1, kind: input, shape index: {}]
  %s2 = inlined_call_operand.vmem [shape: f32[1,128], index: 2, kind: input, shape index: {}]
  %s3 = inlined_call_operand.vmem [shape: f32[3,64,128], index: 3, kind: input, shape index: {}]
  %s4 = inlined_call_operand.vmem [shape: f32[1,128], index: 4, kind: input, shape index: {}]
  %s5 = inlined_call_operand.vmem [shape: f32[2,32,32], index: 5, kind: input, shape index: {}]
  %s6 = inlined_call_operand.vmem [shape: f32[1,32], index: 6, kind: input, shape index: {}]
  %s7 = inlined_call_operand.hbm [shape: f32[2,32], index: 7, kind: output, shape index: {}]
  %s8 = sld [smem:[#allocation0]]
  $region38: #{cnn_forward.1} parent=0
    _
  %s10 = ssub.s32 1, %s8
  %s11 = scalar_select 0, %s10, %s8
  $region1: #{cnn_forward.1} parent=0
    #allocation3 [shape = 'u8[1024]{0}', space=vmem, size = 0x400, scoped, tag = 'output window, operand 0, single buffered']
    #allocation4 [shape = 's32[1]{0}', space=sflag, size = 0x4, scoped, tag = 'scoped memory for cnn_forward.1']
    %12 = vsyncpa [#allocation4], 0
    // Predicated region
    $region2: #{cnn_forward.1} parent=1 // pred_check
      _
    $region3: #{cnn_forward.1} parent=1 // pred_check_branch
      %14 = sbr.rel (0) target = $region5
    $region4: #{cnn_forward.1} parent=1 // pred_region
      _
    $region5: #{cnn_forward.1} parent=1 // pred_fallthru
      _
    // Predicated region
    $region6: #{cnn_forward.1} parent=1 // pred_check
      _
    $region7: #{cnn_forward.1} parent=1 // pred_check_branch
      %16 = sbr.rel (0) target = $region9
    $region8: #{cnn_forward.1} parent=1 // pred_region
      _
    $region9: #{cnn_forward.1} parent=1 // pred_fallthru
      _
    // Predicated region
    $region10: #{cnn_forward.1} parent=1 // pred_check
      _
    $region11: #{cnn_forward.1} parent=1 // pred_check_branch
      %18 = sbr.rel (0) target = $region13
    $region12: #{cnn_forward.1} parent=1 // pred_region
      _
    $region13: #{cnn_forward.1} parent=1 // pred_fallthru
      _
    // Predicated region
    $region14: #{cnn_forward.1} parent=1 // pred_check
      _
    $region15: #{cnn_forward.1} parent=1 // pred_check_branch
      %20 = sbr.rel (0) target = $region17
    $region16: #{cnn_forward.1} parent=1 // pred_region
      _
    $region17: #{cnn_forward.1} parent=1 // pred_fallthru
      _
    // Predicated region
    $region18: #{cnn_forward.1} parent=1 // pred_check
      _
    $region19: #{cnn_forward.1} parent=1 // pred_check_branch
      %22 = sbr.rel (0) target = $region21
    $region20: #{cnn_forward.1} parent=1 // pred_region
      _
    $region21: #{cnn_forward.1} parent=1 // pred_fallthru
      _
    // Predicated region
    $region22: #{cnn_forward.1} parent=1 // pred_check
      _
    $region23: #{cnn_forward.1} parent=1 // pred_check_branch
      %24 = sbr.rel (0) target = $region25
    $region24: #{cnn_forward.1} parent=1 // pred_region
      _
    $region25: #{cnn_forward.1} parent=1 // pred_fallthru
      _
    // Predicated region
    $region26: #{cnn_forward.1} parent=1 // pred_check
      _
    $region27: #{cnn_forward.1} parent=1 // pred_check_branch
      %26 = sbr.rel (0) target = $region29
    $region28: #{cnn_forward.1} parent=1 // pred_region
      _
    $region29: #{cnn_forward.1} parent=1 // pred_fallthru
      _
    %v27 = vld [vmem:[%s0] sm:$0xff]
    %v28 = vld [vmem:[%s0 + $0x8] sm:$0xff]
    %v29 = vld [vmem:[%s0 + $0x10] sm:$0x3]
    %v30 = vld [vmem:[%s0 + $0x18] sm:$0xff]
    %v31 = vld [vmem:[%s0 + $0x20] sm:$0xff]
    %v32 = vld [vmem:[%s0 + $0x28] sm:$0x3]
    %v33 = vld [vmem:[%s2] sm:$0x1]
    %v34 = vld [vmem:[%s1] sm:$0xff]
    %v35 = vld [vmem:[%s1 + $0x8] sm:$0xff]
    %v36 = vld [vmem:[%s1 + $0x10] sm:$0xff]
    %v37 = vld [vmem:[%s1 + $0x18] sm:$0xff]
    %v38 = vld [vmem:[%s1 + $0x20] sm:$0xff]
    %v39 = vld [vmem:[%s1 + $0x28] sm:$0xff]
    %vm40 = vcmask 392192
    %v42 = vsel %vm40, %v27, 0
    %v45 = vsel %vm40, %v28, 0
    %v48 = vsel %vm40, %v30, 0
    %v51 = vsel %vm40, %v31, 0
    %53 = vmatprep.subr.mxu0 0.0
    %54 = vmatpush1.msra.mxu0 0.0
    %55 = vmatprep.subr.mxu0 0.0
    %56 = vmatpush1.msra.mxu0 0.0
    %57 = vmatprep.subr.mxu0 0.0
    %58 = vmatpush1.msra.mxu0 0.0
    %59 = vmatprep.subr.mxu0 0.0
    %60 = vmatpush1.msra.mxu0 0.0
    %61 = vmatprep.subr.mxu0 0.0
    %62 = vmatpush1.msra.mxu0 0.0
    %63 = vmatprep.subr.mxu0 0.0
    %64 = vmatpush1.msra.mxu0 0.0
    %65 = vmatprep.subr.mxu0 0.0
    %66 = vmatpush1.msra.mxu0 0.0
    %67 = vmatprep.subr.mxu0 0.0
    %68 = vmatpush1.msra.mxu0 0.0
    %69 = vmatprep.subr.mxu0 0.0
    %70 = vmatpush1.msra.mxu0 0.0
    %71 = vmatprep.subr.mxu0 0.0
    %72 = vmatpush1.msra.mxu0 0.0
    %73 = vmatprep.subr.mxu0 0.0
    %74 = vmatpush1.msra.mxu0 %v39
    %75 = vmatprep.subr.mxu0 0.0
    %76 = vmatpush1.msra.mxu0 %v38
    %77 = vmatprep.subr.mxu0 0.0
    %78 = vmatpush1.msra.mxu0 %v37
    %79 = vmatprep.subr.mxu0 0.0
    %80 = vmatpush1.msra.mxu0 %v36
    %81 = vmatprep.subr.mxu0 0.0
    %82 = vmatpush1.msra.mxu0 %v35
    %83 = vmatprep.subr.mxu0 0.0
    %84 = vmatpush1.msra.mxu0 %v34
    %85 = vmatprep.subr.mxu0 0.0
    %86 = vmatpush2.msra.mxu0 0.0
    %87 = vmatprep.subr.mxu0 0.0
    %88 = vmatpush2.msra.mxu0 0.0
    %89 = vmatprep.subr.mxu0 0.0
    %90 = vmatpush2.msra.mxu0 0.0
    %91 = vmatprep.subr.mxu0 0.0
    %92 = vmatpush2.msra.mxu0 0.0
    %93 = vmatprep.subr.mxu0 0.0
    %94 = vmatpush2.msra.mxu0 0.0
    %95 = vmatprep.subr.mxu0 0.0
    %96 = vmatpush2.msra.mxu0 0.0
    %97 = vmatprep.subr.mxu0 0.0
    %98 = vmatpush2.msra.mxu0 0.0
    %99 = vmatprep.subr.mxu0 0.0
    %100 = vmatpush2.msra.mxu0 0.0
    %101 = vmatprep.subr.mxu0 0.0
    %102 = vmatpush2.msra.mxu0 0.0
    %103 = vmatprep.subr.mxu0 0.0
    %104 = vmatpush2.msra.mxu0 0.0
    %105 = vmatprep.subr.mxu0 0.0
    %106 = vmatpush2.msra.mxu0 0.0
    %107 = vmatprep.subr.mxu0 0.0
    %108 = vmatpush2.msra.mxu0 0.0
    %109 = vmatprep.subr.mxu0 0.0
    %110 = vmatpush2.msra.mxu0 0.0
    %111 = vmatprep.subr.mxu0 0.0
    %112 = vmatpush2.msra.mxu0 0.0
    %113 = vmatprep.subr.mxu0 0.0
    %114 = vmatpush2.msra.mxu0 0.0
    %115 = vmatprep.subr.mxu0 0.0
    %116 = vmatpush2.msra.mxu0 0.0
    %117 = vmatprep.mubr.f32.mxu0 0.0
    %118 = vmatmul.mubr.f32.gmra.mxu0 %v42
    %v119 = vpop.f32.mrf.mxu0
    %v120 = vadd.f32 0.0, %v119
    %v121 = vpop.f32.mrf.mxu0
    %122 = vmatprep.mubr.f32.mxu0 0.0
    %123 = vmatmul.mubr.f32.gmra.mxu0 %v45
    %v124 = vpop.f32.mrf.mxu0
    %v125 = vadd.f32 0.0, %v124
    %v126 = vpop.f32.mrf.mxu0
    %127 = vmatprep.mubr.f32.mxu0 0.0
    %128 = vmatmul.mubr.f32.gmra.mxu0 %v48
    %v129 = vpop.f32.mrf.mxu0
    %v130 = vadd.f32 0.0, %v129
    %v131 = vpop.f32.mrf.mxu0
    %132 = vmatprep.mubr.f32.mxu0 0.0
    %133 = vmatmul.mubr.f32.gmra.mxu0 %v51
    %v134 = vpop.f32.mrf.mxu0
    %v135 = vadd.f32 0.0, %v134
    %v136 = vpop.f32.mrf.mxu0
    %137 = vdwg.mxu0
    %v139 = vlaneseq
    %v140 = vshrl.u32 %v139, 7
    %v141 = vsub.s32 0, %v140
    %v142 = vrot.slane %v33, %v141
    %v144 = vadd.f32 %v142, %v120
    %v145 = vadd.f32 %v142, %v125
    %v146 = vadd.f32 %v142, %v130
    %v147 = vadd.f32 %v142, %v135
    %vm150 = vcmask 1046528
    %v151 = vrot.slane %v27, 1
    %v152 = vrot.slane %v28, 1
    %v153 = vsel %vm150, %v151, %v152
    %v154 = vrot.slane %v29, 1
    %v155 = vsel %vm150, %v152, %v154
    %v156 = vrot.slane %v30, 1
    %v157 = vrot.slane %v31, 1
    %v158 = vsel %vm150, %v156, %v157
    %v159 = vrot.slane %v32, 1
    %v160 = vsel %vm150, %v157, %v159
    %s161 = scalar_lea.vmem %s1, 48
    %v162 = vld [vmem:[%s161] sm:$0xff]
    %v163 = vld [vmem:[%s161 + $0x8] sm:$0xff]
    %v164 = vld [vmem:[%s161 + $0x10] sm:$0xff]
    %v165 = vld [vmem:[%s161 + $0x18] sm:$0xff]
    %v166 = vld [vmem:[%s161 + $0x20] sm:$0xff]
    %v167 = vld [vmem:[%s161 + $0x28] sm:$0xff]
    %v168 = vsel %vm40, %v153, 0
    %v170 = vsel %vm40, %v155, 0
    %v172 = vsel %vm40, %v158, 0
    %v174 = vsel %vm40, %v160, 0
    %176 = vmatprep.subr.mxu0 0.0
    %177 = vmatpush1.msra.mxu0 0.0
    %178 = vmatprep.subr.mxu0 0.0
    %179 = vmatpush1.msra.mxu0 0.0
    %180 = vmatprep.subr.mxu0 0.0
    %181 = vmatpush1.msra.mxu0 0.0
    %182 = vmatprep.subr.mxu0 0.0
    %183 = vmatpush1.msra.mxu0 0.0
    %184 = vmatprep.subr.mxu0 0.0
    %185 = vmatpush1.msra.mxu0 0.0
    %186 = vmatprep.subr.mxu0 0.0
    %187 = vmatpush1.msra.mxu0 0.0
    %188 = vmatprep.subr.mxu0 0.0
    %189 = vmatpush1.msra.mxu0 0.0
    %190 = vmatprep.subr.mxu0 0.0
    %191 = vmatpush1.msra.mxu0 0.0
    %192 = vmatprep.subr.mxu0 0.0
    %193 = vmatpush1.msra.mxu0 0.0
    %194 = vmatprep.subr.mxu0 0.0
    %195 = vmatpush1.msra.mxu0 0.0
    %196 = vmatprep.subr.mxu0 0.0
    %197 = vmatpush1.msra.mxu0 %v167
    %198 = vmatprep.subr.mxu0 0.0
    %199 = vmatpush1.msra.mxu0 %v166
    %200 = vmatprep.subr.mxu0 0.0
    %201 = vmatpush1.msra.mxu0 %v165
    %202 = vmatprep.subr.mxu0 0.0
    %203 = vmatpush1.msra.mxu0 %v164
    %204 = vmatprep.subr.mxu0 0.0
    %205 = vmatpush1.msra.mxu0 %v163
    %206 = vmatprep.subr.mxu0 0.0
    %207 = vmatpush1.msra.mxu0 %v162
    %208 = vmatprep.subr.mxu0 0.0
    %209 = vmatpush2.msra.mxu0 0.0
    %210 = vmatprep.subr.mxu0 0.0
    %211 = vmatpush2.msra.mxu0 0.0
    %212 = vmatprep.subr.mxu0 0.0
    %213 = vmatpush2.msra.mxu0 0.0
    %214 = vmatprep.subr.mxu0 0.0
    %215 = vmatpush2.msra.mxu0 0.0
    %216 = vmatprep.subr.mxu0 0.0
    %217 = vmatpush2.msra.mxu0 0.0
    %218 = vmatprep.subr.mxu0 0.0
    %219 = vmatpush2.msra.mxu0 0.0
    %220 = vmatprep.subr.mxu0 0.0
    %221 = vmatpush2.msra.mxu0 0.0
    %222 = vmatprep.subr.mxu0 0.0
    %223 = vmatpush2.msra.mxu0 0.0
    %224 = vmatprep.subr.mxu0 0.0
    %225 = vmatpush2.msra.mxu0 0.0
    %226 = vmatprep.subr.mxu0 0.0
    %227 = vmatpush2.msra.mxu0 0.0
    %228 = vmatprep.subr.mxu0 0.0
    %229 = vmatpush2.msra.mxu0 0.0
    %230 = vmatprep.subr.mxu0 0.0
    %231 = vmatpush2.msra.mxu0 0.0
    %232 = vmatprep.subr.mxu0 0.0
    %233 = vmatpush2.msra.mxu0 0.0
    %234 = vmatprep.subr.mxu0 0.0
    %235 = vmatpush2.msra.mxu0 0.0
    %236 = vmatprep.subr.mxu0 0.0
    %237 = vmatpush2.msra.mxu0 0.0
    %238 = vmatprep.subr.mxu0 0.0
    %239 = vmatpush2.msra.mxu0 0.0
    %240 = vmatprep.mubr.f32.mxu0 0.0
    %241 = vmatmul.mubr.f32.gmra.mxu0 %v168
    %v242 = vpop.f32.mrf.mxu0
    %v243 = vadd.f32 0.0, %v242
    %v244 = vpop.f32.mrf.mxu0
    %245 = vmatprep.mubr.f32.mxu0 0.0
    %246 = vmatmul.mubr.f32.gmra.mxu0 %v170
    %v247 = vpop.f32.mrf.mxu0
    %v248 = vadd.f32 0.0, %v247
    %v249 = vpop.f32.mrf.mxu0
    %250 = vmatprep.mubr.f32.mxu0 0.0
    %251 = vmatmul.mubr.f32.gmra.mxu0 %v172
    %v252 = vpop.f32.mrf.mxu0
    %v253 = vadd.f32 0.0, %v252
    %v254 = vpop.f32.mrf.mxu0
    %255 = vmatprep.mubr.f32.mxu0 0.0
    %256 = vmatmul.mubr.f32.gmra.mxu0 %v174
    %v257 = vpop.f32.mrf.mxu0
    %v258 = vadd.f32 0.0, %v257
    %v259 = vpop.f32.mrf.mxu0
    %260 = vdwg.mxu0
    %v261 = vadd.f32 %v144, %v243
    %v262 = vadd.f32 %v145, %v248
    %v263 = vadd.f32 %v146, %v253
    %v264 = vadd.f32 %v147, %v258
    %vm265 = vcmask 1045504
    %v266 = vrot.slane %v27, 2
    %v267 = vrot.slane %v28, 2
    %v268 = vsel %vm265, %v266, %v267
    %v269 = vrot.slane %v29, 2
    %v270 = vsel %vm265, %v267, %v269
    %v271 = vrot.slane %v30, 2
    %v272 = vrot.slane %v31, 2
    %v273 = vsel %vm265, %v271, %v272
    %v274 = vrot.slane %v32, 2
    %v275 = vsel %vm265, %v272, %v274
    %s276 = scalar_lea.vmem %s1, 96
    %v277 = vld [vmem:[%s276] sm:$0xff]
    %v278 = vld [vmem:[%s276 + $0x8] sm:$0xff]
    %v279 = vld [vmem:[%s276 + $0x10] sm:$0xff]
    %v280 = vld [vmem:[%s276 + $0x18] sm:$0xff]
    %v281 = vld [vmem:[%s276 + $0x20] sm:$0xff]
    %v282 = vld [vmem:[%s276 + $0x28] sm:$0xff]
    %v283 = vsel %vm40, %v268, 0
    %v285 = vsel %vm40, %v270, 0
    %v287 = vsel %vm40, %v273, 0
    %v289 = vsel %vm40, %v275, 0
    %291 = vmatprep.subr.mxu0 0.0
    %292 = vmatpush1.msra.mxu0 0.0
    %293 = vmatprep.subr.mxu0 0.0
    %294 = vmatpush1.msra.mxu0 0.0
    %295 = vmatprep.subr.mxu0 0.0
    %296 = vmatpush1.msra.mxu0 0.0
    %297 = vmatprep.subr.mxu0 0.0
    %298 = vmatpush1.msra.mxu0 0.0
    %299 = vmatprep.subr.mxu0 0.0
    %300 = vmatpush1.msra.mxu0 0.0
    %301 = vmatprep.subr.mxu0 0.0
    %302 = vmatpush1.msra.mxu0 0.0
    %303 = vmatprep.subr.mxu0 0.0
    %304 = vmatpush1.msra.mxu0 0.0
    %305 = vmatprep.subr.mxu0 0.0
    %306 = vmatpush1.msra.mxu0 0.0
    %307 = vmatprep.subr.mxu0 0.0
    %308 = vmatpush1.msra.mxu0 0.0
    %309 = vmatprep.subr.mxu0 0.0
    %310 = vmatpush1.msra.mxu0 0.0
    %311 = vmatprep.subr.mxu0 0.0
    %312 = vmatpush1.msra.mxu0 %v282
    %313 = vmatprep.subr.mxu0 0.0
    %314 = vmatpush1.msra.mxu0 %v281
    %315 = vmatprep.subr.mxu0 0.0
    %316 = vmatpush1.msra.mxu0 %v280
    %317 = vmatprep.subr.mxu0 0.0
    %318 = vmatpush1.msra.mxu0 %v279
    %319 = vmatprep.subr.mxu0 0.0
    %320 = vmatpush1.msra.mxu0 %v278
    %321 = vmatprep.subr.mxu0 0.0
    %322 = vmatpush1.msra.mxu0 %v277
    %323 = vmatprep.subr.mxu0 0.0
    %324 = vmatpush2.msra.mxu0 0.0
    %325 = vmatprep.subr.mxu0 0.0
    %326 = vmatpush2.msra.mxu0 0.0
    %327 = vmatprep.subr.mxu0 0.0
    %328 = vmatpush2.msra.mxu0 0.0
    %329 = vmatprep.subr.mxu0 0.0
    %330 = vmatpush2.msra.mxu0 0.0
    %331 = vmatprep.subr.mxu0 0.0
    %332 = vmatpush2.msra.mxu0 0.0
    %333 = vmatprep.subr.mxu0 0.0
    %334 = vmatpush2.msra.mxu0 0.0
    %335 = vmatprep.subr.mxu0 0.0
    %336 = vmatpush2.msra.mxu0 0.0
    %337 = vmatprep.subr.mxu0 0.0
    %338 = vmatpush2.msra.mxu0 0.0
    %339 = vmatprep.subr.mxu0 0.0
    %340 = vmatpush2.msra.mxu0 0.0
    %341 = vmatprep.subr.mxu0 0.0
    %342 = vmatpush2.msra.mxu0 0.0
    %343 = vmatprep.subr.mxu0 0.0
    %344 = vmatpush2.msra.mxu0 0.0
    %345 = vmatprep.subr.mxu0 0.0
    %346 = vmatpush2.msra.mxu0 0.0
    %347 = vmatprep.subr.mxu0 0.0
    %348 = vmatpush2.msra.mxu0 0.0
    %349 = vmatprep.subr.mxu0 0.0
    %350 = vmatpush2.msra.mxu0 0.0
    %351 = vmatprep.subr.mxu0 0.0
    %352 = vmatpush2.msra.mxu0 0.0
    %353 = vmatprep.subr.mxu0 0.0
    %354 = vmatpush2.msra.mxu0 0.0
    %355 = vmatprep.mubr.f32.mxu0 0.0
    %356 = vmatmul.mubr.f32.gmra.mxu0 %v283
    %v357 = vpop.f32.mrf.mxu0
    %v358 = vadd.f32 0.0, %v357
    %v359 = vpop.f32.mrf.mxu0
    %360 = vmatprep.mubr.f32.mxu0 0.0
    %361 = vmatmul.mubr.f32.gmra.mxu0 %v285
    %v362 = vpop.f32.mrf.mxu0
    %v363 = vadd.f32 0.0, %v362
    %v364 = vpop.f32.mrf.mxu0
    %365 = vmatprep.mubr.f32.mxu0 0.0
    %366 = vmatmul.mubr.f32.gmra.mxu0 %v287
    %v367 = vpop.f32.mrf.mxu0
    %v368 = vadd.f32 0.0, %v367
    %v369 = vpop.f32.mrf.mxu0
    %370 = vmatprep.mubr.f32.mxu0 0.0
    %371 = vmatmul.mubr.f32.gmra.mxu0 %v289
    %v372 = vpop.f32.mrf.mxu0
    %v373 = vadd.f32 0.0, %v372
    %v374 = vpop.f32.mrf.mxu0
    %375 = vdwg.mxu0
    %v376 = vadd.f32 %v261, %v358
    %v377 = vadd.f32 %v262, %v363
    %v378 = vadd.f32 %v263, %v368
    %v379 = vadd.f32 %v264, %v373
    %v380 = vmax.f32 %v376, 0.0
    %v381 = vmax.f32 %v377, 0.0
    %v382 = vmax.f32 %v378, 0.0
    %v383 = vmax.f32 %v379, 0.0
    %388 = vrot.lane.b32.xlu0 %v380, 64
    %v389 = vpop.permute.xlu0 %388
    %390 = vrot.lane.b32.xlu0 %v381, 64
    %v391 = vpop.permute.xlu0 %390
    %392 = vrot.lane.b32.xlu0 %v382, 64
    %v393 = vpop.permute.xlu0 %392
    %394 = vrot.lane.b32.xlu0 %v383, 64
    %v395 = vpop.permute.xlu0 %394
    %v400 = vmax.f32 %v380, %v389
    %v401 = vmax.f32 %v381, %v391
    %v402 = vmax.f32 %v382, %v393
    %v403 = vmax.f32 %v383, %v395
    %vm404 = vcmask 523264
    %405 = vst.msk [vmem:[#allocation2] sm:$0xff] %vm404, 0.0
    %vm406 = vcmask 517120
    %407 = vst.msk [vmem:[#allocation2 + $0x8] sm:$0x3] %vm406, 0.0
    %408 = vst.msk [vmem:[#allocation2 + $0x10] sm:$0xff] %vm404, 0.0
    %409 = vst.msk [vmem:[#allocation2 + $0x18] sm:$0x3] %vm406, 0.0
    %v412 = vrot.slane %v400, 1
    %v413 = vrot.slane %v402, 1
    %v416 = vmax.f32 %v400, %v412
    %v417 = vmax.f32 %v402, %v413
    %vm418 = vcmask 516096
    %419 = vst.msk [vmem:[#allocation2 + $0x1] sm:$0x1] %vm418, %v416
    %420 = vst.msk [vmem:[#allocation2 + $0x11] sm:$0x1] %vm418, %v417
    %vm421 = vcmask 518146
    %422 = vst.msk [vmem:[#allocation2] sm:$0x4] %vm421, %v416
    %423 = vst.msk [vmem:[#allocation2 + $0x10] sm:$0x4] %vm421, %v417
    %vm424 = vcmask 520196
    %425 = vst.msk [vmem:[#allocation2 - $0x1] sm:$0x10] %vm424, %v416
    %426 = vst.msk [vmem:[#allocation2 + $0xf] sm:$0x10] %vm424, %v417
    %vm427 = vcmask 522246
    %428 = vst.msk [vmem:[#allocation2 - $0x2] sm:$0x40] %vm427, %v416
    %429 = vst.msk [vmem:[#allocation2 + $0xe] sm:$0x40] %vm427, %v417
    %v432 = vrot.slane %v401, 1
    %v433 = vrot.slane %v403, 1
    %v436 = vmax.f32 %v401, %v432
    %v437 = vmax.f32 %v403, %v433
    %438 = vst.msk [vmem:[#allocation2 + $0x5] sm:$0x1] %vm418, %v436
    %439 = vst.msk [vmem:[#allocation2 + $0x15] sm:$0x1] %vm418, %v437
    %440 = vst.msk [vmem:[#allocation2 + $0x4] sm:$0x4] %vm421, %v436
    %441 = vst.msk [vmem:[#allocation2 + $0x14] sm:$0x4] %vm421, %v437
    %442 = vst.msk [vmem:[#allocation2 + $0x3] sm:$0x10] %vm424, %v436
    %443 = vst.msk [vmem:[#allocation2 + $0x13] sm:$0x10] %vm424, %v437
    %444 = vst.msk [vmem:[#allocation2 + $0x2] sm:$0x40] %vm427, %v436
    %445 = vst.msk [vmem:[#allocation2 + $0x12] sm:$0x40] %vm427, %v437
    %v446 = vld [vmem:[#allocation2] sm:$0xff]
    %v447 = vld [vmem:[#allocation2 + $0x8] sm:$0x3]
    %v448 = vld [vmem:[#allocation2 + $0x10] sm:$0xff]
    %v449 = vld [vmem:[#allocation2 + $0x18] sm:$0x3]
    %v450 = vld [vmem:[%s4] sm:$0x1]
    %v451 = vld [vmem:[%s3] sm:$0xff]
    %v452 = vld [vmem:[%s3 + $0x8] sm:$0xff]
    %v453 = vld [vmem:[%s3 + $0x10] sm:$0xff]
    %v454 = vld [vmem:[%s3 + $0x18] sm:$0xff]
    %v455 = vld [vmem:[%s3 + $0x20] sm:$0xff]
    %v456 = vld [vmem:[%s3 + $0x28] sm:$0xff]
    %v457 = vld [vmem:[%s3 + $0x30] sm:$0xff]
    %v458 = vld [vmem:[%s3 + $0x38] sm:$0xff]
    %v460 = vsel %vm404, %v446, 0
    %v463 = vsel %vm404, %v448, 0
    %465 = vmatprep.subr.mxu0 0.0
    %466 = vmatpush1.msra.mxu0 0.0
    %467 = vmatprep.subr.mxu0 0.0
    %468 = vmatpush1.msra.mxu0 0.0
    %469 = vmatprep.subr.mxu0 0.0
    %470 = vmatpush1.msra.mxu0 0.0
    %471 = vmatprep.subr.mxu0 0.0
    %472 = vmatpush1.msra.mxu0 0.0
    %473 = vmatprep.subr.mxu0 0.0
    %474 = vmatpush1.msra.mxu0 0.0
    %475 = vmatprep.subr.mxu0 0.0
    %476 = vmatpush1.msra.mxu0 0.0
    %477 = vmatprep.subr.mxu0 0.0
    %478 = vmatpush1.msra.mxu0 0.0
    %479 = vmatprep.subr.mxu0 0.0
    %480 = vmatpush1.msra.mxu0 0.0
    %481 = vmatprep.subr.mxu0 0.0
    %482 = vmatpush1.msra.mxu0 %v458
    %483 = vmatprep.subr.mxu0 0.0
    %484 = vmatpush1.msra.mxu0 %v457
    %485 = vmatprep.subr.mxu0 0.0
    %486 = vmatpush1.msra.mxu0 %v456
    %487 = vmatprep.subr.mxu0 0.0
    %488 = vmatpush1.msra.mxu0 %v455
    %489 = vmatprep.subr.mxu0 0.0
    %490 = vmatpush1.msra.mxu0 %v454
    %491 = vmatprep.subr.mxu0 0.0
    %492 = vmatpush1.msra.mxu0 %v453
    %493 = vmatprep.subr.mxu0 0.0
    %494 = vmatpush1.msra.mxu0 %v452
    %495 = vmatprep.subr.mxu0 0.0
    %496 = vmatpush1.msra.mxu0 %v451
    %497 = vmatprep.subr.mxu0 0.0
    %498 = vmatpush2.msra.mxu0 0.0
    %499 = vmatprep.subr.mxu0 0.0
    %500 = vmatpush2.msra.mxu0 0.0
    %501 = vmatprep.subr.mxu0 0.0
    %502 = vmatpush2.msra.mxu0 0.0
    %503 = vmatprep.subr.mxu0 0.0
    %504 = vmatpush2.msra.mxu0 0.0
    %505 = vmatprep.subr.mxu0 0.0
    %506 = vmatpush2.msra.mxu0 0.0
    %507 = vmatprep.subr.mxu0 0.0
    %508 = vmatpush2.msra.mxu0 0.0
    %509 = vmatprep.subr.mxu0 0.0
    %510 = vmatpush2.msra.mxu0 0.0
    %511 = vmatprep.subr.mxu0 0.0
    %512 = vmatpush2.msra.mxu0 0.0
    %513 = vmatprep.subr.mxu0 0.0
    %514 = vmatpush2.msra.mxu0 0.0
    %515 = vmatprep.subr.mxu0 0.0
    %516 = vmatpush2.msra.mxu0 0.0
    %517 = vmatprep.subr.mxu0 0.0
    %518 = vmatpush2.msra.mxu0 0.0
    %519 = vmatprep.subr.mxu0 0.0
    %520 = vmatpush2.msra.mxu0 0.0
    %521 = vmatprep.subr.mxu0 0.0
    %522 = vmatpush2.msra.mxu0 0.0
    %523 = vmatprep.subr.mxu0 0.0
    %524 = vmatpush2.msra.mxu0 0.0
    %525 = vmatprep.subr.mxu0 0.0
    %526 = vmatpush2.msra.mxu0 0.0
    %527 = vmatprep.subr.mxu0 0.0
    %528 = vmatpush2.msra.mxu0 0.0
    %529 = vmatprep.mubr.f32.mxu0 0.0
    %530 = vmatmul.mubr.f32.gmra.mxu0 %v460
    %v531 = vpop.f32.mrf.mxu0
    %v532 = vadd.f32 0.0, %v531
    %v533 = vpop.f32.mrf.mxu0
    %534 = vmatprep.mubr.f32.mxu0 0.0
    %535 = vmatmul.mubr.f32.gmra.mxu0 %v463
    %v536 = vpop.f32.mrf.mxu0
    %v537 = vadd.f32 0.0, %v536
    %v538 = vpop.f32.mrf.mxu0
    %539 = vdwg.mxu0
    %v541 = vlaneseq
    %v542 = vshrl.u32 %v541, 7
    %v543 = vsub.s32 0, %v542
    %v544 = vrot.slane %v450, %v543
    %v546 = vadd.f32 %v544, %v532
    %v547 = vadd.f32 %v544, %v537
    %v550 = vrot.slane %v446, 1
    %v551 = vrot.slane %v447, 1
    %v552 = vsel %vm150, %v550, %v551
    %v553 = vrot.slane %v448, 1
    %v554 = vrot.slane %v449, 1
    %v555 = vsel %vm150, %v553, %v554
    %s556 = scalar_lea.vmem %s3, 64
    %v557 = vld [vmem:[%s556] sm:$0xff]
    %v558 = vld [vmem:[%s556 + $0x8] sm:$0xff]
    %v559 = vld [vmem:[%s556 + $0x10] sm:$0xff]
    %v560 = vld [vmem:[%s556 + $0x18] sm:$0xff]
    %v561 = vld [vmem:[%s556 + $0x20] sm:$0xff]
    %v562 = vld [vmem:[%s556 + $0x28] sm:$0xff]
    %v563 = vld [vmem:[%s556 + $0x30] sm:$0xff]
    %v564 = vld [vmem:[%s556 + $0x38] sm:$0xff]
    %v565 = vsel %vm404, %v552, 0
    %v567 = vsel %vm404, %v555, 0
    %569 = vmatprep.subr.mxu0 0.0
    %570 = vmatpush1.msra.mxu0 0.0
    %571 = vmatprep.subr.mxu0 0.0
    %572 = vmatpush1.msra.mxu0 0.0
    %573 = vmatprep.subr.mxu0 0.0
    %574 = vmatpush1.msra.mxu0 0.0
    %575 = vmatprep.subr.mxu0 0.0
    %576 = vmatpush1.msra.mxu0 0.0
    %577 = vmatprep.subr.mxu0 0.0
    %578 = vmatpush1.msra.mxu0 0.0
    %579 = vmatprep.subr.mxu0 0.0
    %580 = vmatpush1.msra.mxu0 0.0
    %581 = vmatprep.subr.mxu0 0.0
    %582 = vmatpush1.msra.mxu0 0.0
    %583 = vmatprep.subr.mxu0 0.0
    %584 = vmatpush1.msra.mxu0 0.0
    %585 = vmatprep.subr.mxu0 0.0
    %586 = vmatpush1.msra.mxu0 %v564
    %587 = vmatprep.subr.mxu0 0.0
    %588 = vmatpush1.msra.mxu0 %v563
    %589 = vmatprep.subr.mxu0 0.0
    %590 = vmatpush1.msra.mxu0 %v562
    %591 = vmatprep.subr.mxu0 0.0
    %592 = vmatpush1.msra.mxu0 %v561
    %593 = vmatprep.subr.mxu0 0.0
    %594 = vmatpush1.msra.mxu0 %v560
    %595 = vmatprep.subr.mxu0 0.0
    %596 = vmatpush1.msra.mxu0 %v559
    %597 = vmatprep.subr.mxu0 0.0
    %598 = vmatpush1.msra.mxu0 %v558
    %599 = vmatprep.subr.mxu0 0.0
    %600 = vmatpush1.msra.mxu0 %v557
    %601 = vmatprep.subr.mxu0 0.0
    %602 = vmatpush2.msra.mxu0 0.0
    %603 = vmatprep.subr.mxu0 0.0
    %604 = vmatpush2.msra.mxu0 0.0
    %605 = vmatprep.subr.mxu0 0.0
    %606 = vmatpush2.msra.mxu0 0.0
    %607 = vmatprep.subr.mxu0 0.0
    %608 = vmatpush2.msra.mxu0 0.0
    %609 = vmatprep.subr.mxu0 0.0
    %610 = vmatpush2.msra.mxu0 0.0
    %611 = vmatprep.subr.mxu0 0.0
    %612 = vmatpush2.msra.mxu0 0.0
    %613 = vmatprep.subr.mxu0 0.0
    %614 = vmatpush2.msra.mxu0 0.0
    %615 = vmatprep.subr.mxu0 0.0
    %616 = vmatpush2.msra.mxu0 0.0
    %617 = vmatprep.subr.mxu0 0.0
    %618 = vmatpush2.msra.mxu0 0.0
    %619 = vmatprep.subr.mxu0 0.0
    %620 = vmatpush2.msra.mxu0 0.0
    %621 = vmatprep.subr.mxu0 0.0
    %622 = vmatpush2.msra.mxu0 0.0
    %623 = vmatprep.subr.mxu0 0.0
    %624 = vmatpush2.msra.mxu0 0.0
    %625 = vmatprep.subr.mxu0 0.0
    %626 = vmatpush2.msra.mxu0 0.0
    %627 = vmatprep.subr.mxu0 0.0
    %628 = vmatpush2.msra.mxu0 0.0
    %629 = vmatprep.subr.mxu0 0.0
    %630 = vmatpush2.msra.mxu0 0.0
    %631 = vmatprep.subr.mxu0 0.0
    %632 = vmatpush2.msra.mxu0 0.0
    %633 = vmatprep.mubr.f32.mxu0 0.0
    %634 = vmatmul.mubr.f32.gmra.mxu0 %v565
    %v635 = vpop.f32.mrf.mxu0
    %v636 = vadd.f32 0.0, %v635
    %v637 = vpop.f32.mrf.mxu0
    %638 = vmatprep.mubr.f32.mxu0 0.0
    %639 = vmatmul.mubr.f32.gmra.mxu0 %v567
    %v640 = vpop.f32.mrf.mxu0
    %v641 = vadd.f32 0.0, %v640
    %v642 = vpop.f32.mrf.mxu0
    %643 = vdwg.mxu0
    %v644 = vadd.f32 %v546, %v636
    %v645 = vadd.f32 %v547, %v641
    %v646 = vrot.slane %v446, 2
    %v647 = vrot.slane %v447, 2
    %v648 = vsel %vm265, %v646, %v647
    %v649 = vrot.slane %v448, 2
    %v650 = vrot.slane %v449, 2
    %v651 = vsel %vm265, %v649, %v650
    %s652 = scalar_lea.vmem %s3, 128
    %v653 = vld [vmem:[%s652] sm:$0xff]
    %v654 = vld [vmem:[%s652 + $0x8] sm:$0xff]
    %v655 = vld [vmem:[%s652 + $0x10] sm:$0xff]
    %v656 = vld [vmem:[%s652 + $0x18] sm:$0xff]
    %v657 = vld [vmem:[%s652 + $0x20] sm:$0xff]
    %v658 = vld [vmem:[%s652 + $0x28] sm:$0xff]
    %v659 = vld [vmem:[%s652 + $0x30] sm:$0xff]
    %v660 = vld [vmem:[%s652 + $0x38] sm:$0xff]
    %v661 = vsel %vm404, %v648, 0
    %v663 = vsel %vm404, %v651, 0
    %665 = vmatprep.subr.mxu0 0.0
    %666 = vmatpush1.msra.mxu0 0.0
    %667 = vmatprep.subr.mxu0 0.0
    %668 = vmatpush1.msra.mxu0 0.0
    %669 = vmatprep.subr.mxu0 0.0
    %670 = vmatpush1.msra.mxu0 0.0
    %671 = vmatprep.subr.mxu0 0.0
    %672 = vmatpush1.msra.mxu0 0.0
    %673 = vmatprep.subr.mxu0 0.0
    %674 = vmatpush1.msra.mxu0 0.0
    %675 = vmatprep.subr.mxu0 0.0
    %676 = vmatpush1.msra.mxu0 0.0
    %677 = vmatprep.subr.mxu0 0.0
    %678 = vmatpush1.msra.mxu0 0.0
    %679 = vmatprep.subr.mxu0 0.0
    %680 = vmatpush1.msra.mxu0 0.0
    %681 = vmatprep.subr.mxu0 0.0
    %682 = vmatpush1.msra.mxu0 %v660
    %683 = vmatprep.subr.mxu0 0.0
    %684 = vmatpush1.msra.mxu0 %v659
    %685 = vmatprep.subr.mxu0 0.0
    %686 = vmatpush1.msra.mxu0 %v658
    %687 = vmatprep.subr.mxu0 0.0
    %688 = vmatpush1.msra.mxu0 %v657
    %689 = vmatprep.subr.mxu0 0.0
    %690 = vmatpush1.msra.mxu0 %v656
    %691 = vmatprep.subr.mxu0 0.0
    %692 = vmatpush1.msra.mxu0 %v655
    %693 = vmatprep.subr.mxu0 0.0
    %694 = vmatpush1.msra.mxu0 %v654
    %695 = vmatprep.subr.mxu0 0.0
    %696 = vmatpush1.msra.mxu0 %v653
    %697 = vmatprep.subr.mxu0 0.0
    %698 = vmatpush2.msra.mxu0 0.0
    %699 = vmatprep.subr.mxu0 0.0
    %700 = vmatpush2.msra.mxu0 0.0
    %701 = vmatprep.subr.mxu0 0.0
    %702 = vmatpush2.msra.mxu0 0.0
    %703 = vmatprep.subr.mxu0 0.0
    %704 = vmatpush2.msra.mxu0 0.0
    %705 = vmatprep.subr.mxu0 0.0
    %706 = vmatpush2.msra.mxu0 0.0
    %707 = vmatprep.subr.mxu0 0.0
    %708 = vmatpush2.msra.mxu0 0.0
    %709 = vmatprep.subr.mxu0 0.0
    %710 = vmatpush2.msra.mxu0 0.0
    %711 = vmatprep.subr.mxu0 0.0
    %712 = vmatpush2.msra.mxu0 0.0
    %713 = vmatprep.subr.mxu0 0.0
    %714 = vmatpush2.msra.mxu0 0.0
    %715 = vmatprep.subr.mxu0 0.0
    %716 = vmatpush2.msra.mxu0 0.0
    %717 = vmatprep.subr.mxu0 0.0
    %718 = vmatpush2.msra.mxu0 0.0
    %719 = vmatprep.subr.mxu0 0.0
    %720 = vmatpush2.msra.mxu0 0.0
    %721 = vmatprep.subr.mxu0 0.0
    %722 = vmatpush2.msra.mxu0 0.0
    %723 = vmatprep.subr.mxu0 0.0
    %724 = vmatpush2.msra.mxu0 0.0
    %725 = vmatprep.subr.mxu0 0.0
    %726 = vmatpush2.msra.mxu0 0.0
    %727 = vmatprep.subr.mxu0 0.0
    %728 = vmatpush2.msra.mxu0 0.0
    %729 = vmatprep.mubr.f32.mxu0 0.0
    %730 = vmatmul.mubr.f32.gmra.mxu0 %v661
    %v731 = vpop.f32.mrf.mxu0
    %v732 = vadd.f32 0.0, %v731
    %v733 = vpop.f32.mrf.mxu0
    %734 = vmatprep.mubr.f32.mxu0 0.0
    %735 = vmatmul.mubr.f32.gmra.mxu0 %v663
    %v736 = vpop.f32.mrf.mxu0
    %v737 = vadd.f32 0.0, %v736
    %v738 = vpop.f32.mrf.mxu0
    %739 = vdwg.mxu0
    %v740 = vadd.f32 %v644, %v732
    %v741 = vadd.f32 %v645, %v737
    %v742 = vmax.f32 %v740, 0.0
    %v743 = vmax.f32 %v741, 0.0
    %746 = vrot.lane.b32.xlu0 %v742, 64
    %v747 = vpop.permute.xlu0 %746
    %748 = vrot.lane.b32.xlu0 %v743, 64
    %v749 = vpop.permute.xlu0 %748
    %v752 = vmax.f32 %v742, %v747
    %v753 = vmax.f32 %v743, %v749
    %v756 = vrot.slane %v752, 1
    %v757 = vrot.slane %v753, 1
    %v760 = vmax.f32 %v752, %v756
    %v761 = vmax.f32 %v753, %v757
    %v764 = vrot.slane %v760, 2
    %v765 = vrot.slane %v761, 2
    %v768 = vadd.f32 %v760, %v764
    %v769 = vadd.f32 %v761, %v765
    %772 = vrot.lane.b32.xlu0 %v768, 96
    %v773 = vpop.permute.xlu0 %772
    %774 = vrot.lane.b32.xlu0 %v769, 96
    %v775 = vpop.permute.xlu0 %774
    %v778 = vadd.f32 %v768, %v773
    %v779 = vadd.f32 %v769, %v775
    %v780 = vmul.f32 %v778, 0.25
    %v781 = vmul.f32 %v779, 0.25
    %v782 = vld [vmem:[%s5] sm:$0xff]
    %v783 = vld [vmem:[%s5 + $0x8] sm:$0xff]
    %v784 = vld [vmem:[%s5 + $0x10] sm:$0xff]
    %v785 = vld [vmem:[%s5 + $0x18] sm:$0xff]
    %s786 = scalar_lea.vmem %s5, 32
    %v787 = vld [vmem:[%s786] sm:$0xff]
    %v788 = vld [vmem:[%s786 + $0x8] sm:$0xff]
    %v789 = vld [vmem:[%s786 + $0x10] sm:$0xff]
    %v790 = vld [vmem:[%s786 + $0x18] sm:$0xff]
    %v793 = vrot.slane %v780, 4
    %v794 = vrot.slane %v781, 3
    %vm795 = vcmask 1041409
    %v796 = vsel %vm795, %v794, %v793
    %vm797 = vcmask 261120
    %v798 = vsel %vm797, %v796, 0
    %800 = vmatprep.subr.mxu0 0.0
    %801 = vmatpush1.msra.mxu0 0.0
    %802 = vmatprep.subr.mxu0 0.0
    %803 = vmatpush1.msra.mxu0 0.0
    %804 = vmatprep.subr.mxu0 0.0
    %805 = vmatpush1.msra.mxu0 0.0
    %806 = vmatprep.subr.mxu0 0.0
    %807 = vmatpush1.msra.mxu0 0.0
    %808 = vmatprep.subr.mxu0 0.0
    %809 = vmatpush1.msra.mxu0 0.0
    %810 = vmatprep.subr.mxu0 0.0
    %811 = vmatpush1.msra.mxu0 0.0
    %812 = vmatprep.subr.mxu0 0.0
    %813 = vmatpush1.msra.mxu0 0.0
    %814 = vmatprep.subr.mxu0 0.0
    %815 = vmatpush1.msra.mxu0 0.0
    %816 = vmatprep.subr.mxu0 0.0
    %817 = vmatpush1.msra.mxu0 0.0
    %818 = vmatprep.subr.mxu0 0.0
    %819 = vmatpush1.msra.mxu0 0.0
    %820 = vmatprep.subr.mxu0 0.0
    %821 = vmatpush1.msra.mxu0 0.0
    %822 = vmatprep.subr.mxu0 0.0
    %823 = vmatpush1.msra.mxu0 0.0
    %824 = vmatprep.subr.mxu0 0.0
    %825 = vmatpush1.msra.mxu0 %v790
    %826 = vmatprep.subr.mxu0 0.0
    %827 = vmatpush1.msra.mxu0 %v789
    %828 = vmatprep.subr.mxu0 0.0
    %829 = vmatpush1.msra.mxu0 %v788
    %830 = vmatprep.subr.mxu0 0.0
    %831 = vmatpush1.msra.mxu0 %v787
    %832 = vmatprep.subr.mxu0 0.0
    %833 = vmatpush2.msra.mxu0 0.0
    %834 = vmatprep.subr.mxu0 0.0
    %835 = vmatpush2.msra.mxu0 0.0
    %836 = vmatprep.subr.mxu0 0.0
    %837 = vmatpush2.msra.mxu0 0.0
    %838 = vmatprep.subr.mxu0 0.0
    %839 = vmatpush2.msra.mxu0 0.0
    %840 = vmatprep.subr.mxu0 0.0
    %841 = vmatpush2.msra.mxu0 0.0
    %842 = vmatprep.subr.mxu0 0.0
    %843 = vmatpush2.msra.mxu0 0.0
    %844 = vmatprep.subr.mxu0 0.0
    %845 = vmatpush2.msra.mxu0 0.0
    %846 = vmatprep.subr.mxu0 0.0
    %847 = vmatpush2.msra.mxu0 0.0
    %848 = vmatprep.subr.mxu0 0.0
    %849 = vmatpush2.msra.mxu0 0.0
    %850 = vmatprep.subr.mxu0 0.0
    %851 = vmatpush2.msra.mxu0 0.0
    %852 = vmatprep.subr.mxu0 0.0
    %853 = vmatpush2.msra.mxu0 0.0
    %854 = vmatprep.subr.mxu0 0.0
    %855 = vmatpush2.msra.mxu0 0.0
    %856 = vmatprep.subr.mxu0 0.0
    %857 = vmatpush2.msra.mxu0 0.0
    %858 = vmatprep.subr.mxu0 0.0
    %859 = vmatpush2.msra.mxu0 0.0
    %860 = vmatprep.subr.mxu0 0.0
    %861 = vmatpush2.msra.mxu0 0.0
    %862 = vmatprep.subr.mxu0 0.0
    %863 = vmatpush2.msra.mxu0 0.0
    %864 = vmatprep.mubr.f32.mxu0 0.0
    %865 = vmatmul.mubr.f32.gmra.mxu0 %v798
    %v866 = vpop.f32.mrf.mxu0
    %v867 = vadd.f32 0.0, %v866
    %v868 = vpop.f32.mrf.mxu0
    %869 = vdwg.mxu0
    %v870 = vrot.slane %v781, 7
    %v871 = vsel %vm795, %v870, %v780
    %v872 = vsel %vm797, %v871, 0
    %874 = vmatprep.subr.mxu0 0.0
    %875 = vmatpush1.msra.mxu0 0.0
    %876 = vmatprep.subr.mxu0 0.0
    %877 = vmatpush1.msra.mxu0 0.0
    %878 = vmatprep.subr.mxu0 0.0
    %879 = vmatpush1.msra.mxu0 0.0
    %880 = vmatprep.subr.mxu0 0.0
    %881 = vmatpush1.msra.mxu0 0.0
    %882 = vmatprep.subr.mxu0 0.0
    %883 = vmatpush1.msra.mxu0 0.0
    %884 = vmatprep.subr.mxu0 0.0
    %885 = vmatpush1.msra.mxu0 0.0
    %886 = vmatprep.subr.mxu0 0.0
    %887 = vmatpush1.msra.mxu0 0.0
    %888 = vmatprep.subr.mxu0 0.0
    %889 = vmatpush1.msra.mxu0 0.0
    %890 = vmatprep.subr.mxu0 0.0
    %891 = vmatpush1.msra.mxu0 0.0
    %892 = vmatprep.subr.mxu0 0.0
    %893 = vmatpush1.msra.mxu0 0.0
    %894 = vmatprep.subr.mxu0 0.0
    %895 = vmatpush1.msra.mxu0 0.0
    %896 = vmatprep.subr.mxu0 0.0
    %897 = vmatpush1.msra.mxu0 0.0
    %898 = vmatprep.subr.mxu0 0.0
    %899 = vmatpush1.msra.mxu0 %v785
    %900 = vmatprep.subr.mxu0 0.0
    %901 = vmatpush1.msra.mxu0 %v784
    %902 = vmatprep.subr.mxu0 0.0
    %903 = vmatpush1.msra.mxu0 %v783
    %904 = vmatprep.subr.mxu0 0.0
    %905 = vmatpush1.msra.mxu0 %v782
    %906 = vmatprep.subr.mxu0 0.0
    %907 = vmatpush2.msra.mxu0 0.0
    %908 = vmatprep.subr.mxu0 0.0
    %909 = vmatpush2.msra.mxu0 0.0
    %910 = vmatprep.subr.mxu0 0.0
    %911 = vmatpush2.msra.mxu0 0.0
    %912 = vmatprep.subr.mxu0 0.0
    %913 = vmatpush2.msra.mxu0 0.0
    %914 = vmatprep.subr.mxu0 0.0
    %915 = vmatpush2.msra.mxu0 0.0
    %916 = vmatprep.subr.mxu0 0.0
    %917 = vmatpush2.msra.mxu0 0.0
    %918 = vmatprep.subr.mxu0 0.0
    %919 = vmatpush2.msra.mxu0 0.0
    %920 = vmatprep.subr.mxu0 0.0
    %921 = vmatpush2.msra.mxu0 0.0
    %922 = vmatprep.subr.mxu0 0.0
    %923 = vmatpush2.msra.mxu0 0.0
    %924 = vmatprep.subr.mxu0 0.0
    %925 = vmatpush2.msra.mxu0 0.0
    %926 = vmatprep.subr.mxu0 0.0
    %927 = vmatpush2.msra.mxu0 0.0
    %928 = vmatprep.subr.mxu0 0.0
    %929 = vmatpush2.msra.mxu0 0.0
    %930 = vmatprep.subr.mxu0 0.0
    %931 = vmatpush2.msra.mxu0 0.0
    %932 = vmatprep.subr.mxu0 0.0
    %933 = vmatpush2.msra.mxu0 0.0
    %934 = vmatprep.subr.mxu0 0.0
    %935 = vmatpush2.msra.mxu0 0.0
    %936 = vmatprep.subr.mxu0 0.0
    %937 = vmatpush2.msra.mxu0 0.0
    %938 = vmatprep.mubr.f32.mxu0 0.0
    %939 = vmatmul.mubr.f32.gmra.mxu0 %v872
    %v940 = vpop.f32.mrf.mxu0
    %v941 = vadd.f32 %v867, %v940
    %v942 = vpop.f32.mrf.mxu0
    %943 = vdwg.mxu0
    %v944 = vld [vmem:[%s6] sm:$0x1]
    %v946 = vlaneseq
    %v947 = vshrl.u32 %v946, 7
    %v948 = vsub.s32 0, %v947
    %v949 = vrot.slane %v944, %v948
    %v951 = vadd.f32 %v941, %v949
    %vm952 = vcmask 254976
    %953 = vst.msk [vmem:[#allocation3] sm:$0x3] %vm952, %v951
    // Predicated region
    $region30: #{cnn_forward.1} parent=1 // pred_check
      _
    $region31: #{cnn_forward.1} parent=1 // pred_check_branch
      %955 = sbr.rel (0) target = $region33
    $region32: #{cnn_forward.1} parent=1 // pred_region
      %s957 = ssub.s32 32, 32
      %958 = vsyncadd [#allocation4], %s957
      %s960 = sshll.u32 [#allocation3], 4
      %s961 = int_to_ptr.vmem [resolvable:$true] %s960
      %963 = dma.vmem_to_hbm [thread:$0]  %s961, 32, %s7, [#allocation4]
    $region33: #{cnn_forward.1} parent=1 // pred_fallthru
      _
    // Predicated region
    $region34: #{cnn_forward.1} parent=1 // pred_check
      _
    $region35: #{cnn_forward.1} parent=1 // pred_check_branch
      %965 = sbr.rel (0) target = $region37
    $region36: #{cnn_forward.1} parent=1 // pred_region
      %966 = dma.done [#allocation4], 32
    $region37: #{cnn_forward.1} parent=1 // pred_fallthru
      _
    %967 = vsyncpa [#allocation4], 1

</llo_original>
